<compile_context>
chip_gen: v7x
topology: tpu7x:2x2x1
jax: 0.10.0
libtpu: 0.0.40
codegen_flags: <defaults>
</compile_context>

<pallas_src>
import functools

import numpy as np
import jax
import jax.numpy as jnp
from jax import lax
from jax.experimental import pallas as pl
from jax.experimental.pallas import tpu as pltpu


# ----------------------------------------------------------------------------
# Fused kernel: RegMetricLoss_Protos + TripletLoss (flip-permutation form).
# ----------------------------------------------------------------------------
def _fused_loss_kernel(dist_ref, label_ref, proto_ref, c1_ref, c2_ref, c2f_ref,
                       out_ref, *, sigma, w_leak, margin, dim2, inv_trip_norm):
    # ---- RegMetricLoss_Protos ----------------------------------------------
    # loss = sum(w * |distances - |label - proto||) / (sum(w) + 1e-9)
    # w    = exp(-(|label - proto| / sigma)^2 / 2) + w_leak
    l_dist = jnp.abs(label_ref[...] - proto_ref[...])                  # (N, P)
    w = jnp.exp(-jnp.square(l_dist / sigma) * 0.5) + w_leak            # (N, P)
    diff = jnp.abs(dist_ref[...] - l_dist)                             # (N, P)
    num = jnp.sum(w * diff, axis=(0, 1), keepdims=True)                # (1, 1)
    den = jnp.sum(w, axis=(0, 1), keepdims=True) + 1e-9                # (1, 1)
    metric = num / den                                                  # (1, 1)

    # ---- TripletLoss ---------------------------------------------------------
    # flip correspondence is a permutation:
    #   pos_i = ||c1[:, i] - c2[:, flip(i)]||   (c2f is c2 pre-flipped along W)
    #   neg_i = ||c1[:, i] - c2[:, i]||
    # averaged over rows with flip(i) != i and over the batch.
    x1 = c1_ref[...]                                                    # (N, C, R)
    d_pos = x1 - c2f_ref[...]
    d_neg = x1 - c2_ref[...]
    pos = jnp.sqrt(jnp.sum(d_pos * d_pos, axis=1))                      # (N, R)
    neg = jnp.sqrt(jnp.sum(d_neg * d_neg, axis=1))                      # (N, R)

    r_idx = lax.broadcasted_iota(jnp.int32, pos.shape, 1)               # flat index in R
    col = r_idx % dim2                                                  # column within W
    mask = (2 * col != (dim2 - 1)).astype(jnp.float32)                  # 1 iff flip(i) != i
    trip = mask * jnp.maximum(pos - neg + margin, 0.0)                  # (N, R)
    triplet = jnp.sum(trip, axis=(0, 1), keepdims=True) * inv_trip_norm  # (1, 1)

    # Lane-dense output slab: lane 0 = metric loss, lane 1 = triplet loss.
    lane = lax.broadcasted_iota(jnp.int32, out_ref.shape, 1)
    out_ref[...] = (jnp.where(lane == 0, metric, 0.0)
                    + jnp.where(lane == 1, triplet, 0.0))


def fused_losses(min_distances, label, proto_classes, convs_1, convs_2,
                 *, sigma, w_leak, margin, proto_dims):
    """Single-launch computation of (metric_loss, triplet_loss)."""
    n, p = min_distances.shape
    label2 = jnp.asarray(label, jnp.float32).reshape(n, 1)
    proto2 = jnp.asarray(proto_classes, jnp.float32).reshape(1, p)

    nb, c, h, w = convs_1.shape
    assert (h, w) == tuple(proto_dims), "conv feature map must match proto_dims"
    r = h * w
    # NCHW -> (N, C, R): pure reshape, no transpose / extra memory pass.
    c1 = jnp.asarray(convs_1, jnp.float32).reshape(nb, c, r)
    c2 = jnp.asarray(convs_2, jnp.float32).reshape(nb, c, r)
    c2f = jnp.flip(jnp.asarray(convs_2, jnp.float32), axis=3).reshape(nb, c, r)

    # rows whose horizontal flip maps to a *different* position
    num_sel = r - (h if (w % 2 == 1) else 0)
    # NOTE: mask is batch-independent, so sum(trip) / (num_sel * N) equals
    # torch's per-sample masked_select().mean() followed by a batch mean.
    inv_trip_norm = 1.0 / float(max(num_sel, 1) * nb)

    kernel = functools.partial(
        _fused_loss_kernel, sigma=float(sigma), w_leak=float(w_leak),
        margin=float(margin), dim2=int(w), inv_trip_norm=inv_trip_norm)

    out = pl.pallas_call(
        kernel,
        out_shape=jax.ShapeDtypeStruct((1, 128), jnp.float32),
        grid_spec=pltpu.PrefetchScalarGridSpec(
            num_scalar_prefetch=0,
            grid=(1,),
            in_specs=[
                pl.BlockSpec((n, p), lambda i: (0, 0)),
                pl.BlockSpec((n, 1), lambda i: (0, 0)),
                pl.BlockSpec((1, p), lambda i: (0, 0)),
                pl.BlockSpec((nb, c, r), lambda i: (0, 0, 0)),
                pl.BlockSpec((nb, c, r), lambda i: (0, 0, 0)),
                pl.BlockSpec((nb, c, r), lambda i: (0, 0, 0)),
            ],
            out_specs=pl.BlockSpec((1, 128), lambda i: (0, 0)),
        ),
        compiler_params=pltpu.CompilerParams(
            dimension_semantics=("arbitrary",)),
    )(jnp.asarray(min_distances, jnp.float32), label2, proto2, c1, c2, c2f)

    metric = out[0, 0]
    triplet = out[0, 1] if num_sel > 0 else jnp.float32(0.0)
    return metric, triplet


# ----------------------------------------------------------------------------
# RegressionMetric_total equivalent
# ----------------------------------------------------------------------------
class LossCoefs:
    def __init__(self, metric=1.0, triplet_loss=0.5, metric_sigma=1.0,
                 w_leak=0.2, triplet_margin=0.1):
        self.metric = metric
        self.triplet_loss = triplet_loss
        self.metric_sigma = metric_sigma
        self.w_leak = w_leak
        self.triplet_margin = triplet_margin


def regression_metric_total(label, proto_classes, forward_dict, forward_dict_transf,
                            coefs, proto_dims=(5, 5)):
    use_metric = coefs.metric > 0
    use_triplet = (coefs.triplet_loss != 0) and (forward_dict_transf is not None)

    losses = {}
    total = jnp.float32(0.0)
    if not (use_metric or use_triplet):
        losses["total_loss"] = total
        return losses

    # Dummy inputs for the unused branch keep a single fused launch.
    if use_metric:
        min_d, lab, protos = forward_dict["min_distances"], label, proto_classes
    else:
        min_d = jnp.zeros((1, 1), jnp.float32)
        lab = jnp.zeros((1,), jnp.float32)
        protos = jnp.zeros((1,), jnp.float32)
    if use_triplet:
        c1 = forward_dict["conv_features"]
        c2 = forward_dict_transf["conv_features"]
    else:
        c1 = jnp.zeros((1, 1, proto_dims[0], proto_dims[1]), jnp.float32)
        c2 = c1

    metric, triplet = fused_losses(
        min_d, lab, protos, c1, c2,
        sigma=coefs.metric_sigma, w_leak=coefs.w_leak,
        margin=coefs.triplet_margin, proto_dims=proto_dims)

    if use_metric:
        losses["Metric"] = metric
        total = total + metric * coefs.metric
    if use_triplet:
        losses["triplet_loss"] = triplet
        # torch only adds when tripletloss != 0; keep it data-dependent.
        total = total + jnp.where(triplet != 0, triplet * coefs.triplet_loss, 0.0)
    losses["total_loss"] = total
    return losses


# ----------------------------------------------------------------------------
# Pure-JAX reference (direct port of the torch spec) for a correctness check.
# ----------------------------------------------------------------------------
def _reference_losses(label, proto_classes, min_distances, c1_nchw, c2_nchw,
                      sigma, w_leak, margin, h, w):
    l_dist = jnp.abs(label[:, None] - proto_classes[None, :])
    wgt = jnp.exp(-((l_dist / sigma) ** 2) / 2) + w_leak
    metric = jnp.sum(wgt * jnp.abs(min_distances - l_dist)) / (jnp.sum(wgt) + 1e-9)

    n, c = c1_nchw.shape[0], c1_nchw.shape[1]
    r = h * w
    a = c1_nchw.reshape(n, c, r).transpose(0, 2, 1)
    b = c2_nchw.reshape(n, c, r).transpose(0, 2, 1)
    dists = jnp.sqrt(jnp.maximum(
        jnp.sum((a[:, :, None, :] - b[:, None, :, :]) ** 2, axis=-1), 0.0))
    pos_enc = jnp.arange(r, dtype=jnp.float32).reshape(h, w)
    flipped = jnp.flip(pos_enc, axis=1)
    corr = (jnp.abs(pos_enc.reshape(-1, 1) - flipped.reshape(1, -1)) == 0).astype(jnp.float32)
    eye = jnp.eye(r, dtype=jnp.float32)
    transf = jnp.clip(corr - eye, 0.0, None)
    spatial = jnp.clip(eye - corr, 0.0, None)
    pos_pairs = (jnp.max(transf, axis=1) > 0)[None, :]
    pos_d = jnp.sum(dists * transf, axis=-1) / jnp.clip(jnp.sum(transf, axis=1), 1.0, None)
    neg_d = jnp.sum(dists * spatial, axis=-1)
    num_sel = r - (h if (w % 2 == 1) else 0)
    trip = jnp.where(pos_pairs, jnp.maximum(pos_d - neg_d + margin, 0.0), 0.0)
    triplet = jnp.sum(trip) / float(max(num_sel, 1) * n)
    return metric, triplet


if __name__ == "__main__":
    key = jax.random.PRNGKey(0)
    k1, k2, k3, k4 = jax.random.split(key, 4)

    N, C, H, W = 2, 4, 5, 5          # conv_features: [N, C, 5, 5] -> R = 25
    P = 10                           # number of prototypes

    label = jax.random.uniform(k1, (N,), dtype=jnp.float32) * 10.0
    proto_classes = jnp.linspace(0.0, 9.0, P, dtype=jnp.float32)
    min_distances = jax.random.uniform(k2, (N, P), dtype=jnp.float32) * 5.0
    conv_features = jax.random.normal(k3, (N, C, H, W), dtype=jnp.float32)
    conv_features_transf = jax.random.normal(k4, (N, C, H, W), dtype=jnp.float32)

    coefs = LossCoefs(metric=1.0, triplet_loss=0.5, metric_sigma=1.0,
                      w_leak=0.2, triplet_margin=0.1)

    forward_dict = {"min_distances": min_distances, "conv_features": conv_features}
    forward_dict_transf = {"conv_features": conv_features_transf}

    losses = regression_metric_total(label, proto_classes, forward_dict,
                                     forward_dict_transf, coefs, proto_dims=(H, W))
    jax.block_until_ready(losses["total_loss"])

    m_ref, t_ref = _reference_losses(label, proto_classes, min_distances,
                                     conv_features, conv_features_transf,
                                     coefs.metric_sigma, coefs.w_leak,
                                     coefs.triplet_margin, H, W)
    np.testing.assert_allclose(np.asarray(losses["Metric"]), np.asarray(m_ref),
                               rtol=2e-4, atol=1e-5)
    np.testing.assert_allclose(np.asarray(losses["triplet_loss"]), np.asarray(t_ref),
                               rtol=2e-4, atol=1e-5)
    print("KERNEL_OK")
</pallas_src>

<mosaic_0001>
module attributes {stable_mosaic.version = 11 : i64} {
  func.func @_fused_loss_kernel(%arg0: i32, %arg1: memref<2x10xf32, #tpu.memory_space<vmem>>, %arg2: memref<2x1xf32, #tpu.memory_space<vmem>>, %arg3: memref<1x10xf32, #tpu.memory_space<vmem>>, %arg4: memref<2x4x25xf32, #tpu.memory_space<vmem>>, %arg5: memref<2x4x25xf32, #tpu.memory_space<vmem>>, %arg6: memref<2x4x25xf32, #tpu.memory_space<vmem>>, %arg7: memref<1x128xf32, #tpu.memory_space<vmem>>) attributes {dimension_semantics = [#tpu.dimension_semantics<arbitrary>], iteration_bounds = array<i64: 1>, scalar_prefetch = 0 : i64, scratch_operands = 0 : i64, tpu.core_type = #tpu.core_type<tc>, window_params = [{pipeline_mode = #tpu.pipeline_mode<synchronous>, transform_indices = @transform_0, window_bounds = array<i64: 2, 10>}, {pipeline_mode = #tpu.pipeline_mode<synchronous>, transform_indices = @transform_1, window_bounds = array<i64: 2, 1>}, {pipeline_mode = #tpu.pipeline_mode<synchronous>, transform_indices = @transform_2, window_bounds = array<i64: 1, 10>}, {pipeline_mode = #tpu.pipeline_mode<synchronous>, transform_indices = @transform_3, window_bounds = array<i64: 2, 4, 25>}, {pipeline_mode = #tpu.pipeline_mode<synchronous>, transform_indices = @transform_4, window_bounds = array<i64: 2, 4, 25>}, {pipeline_mode = #tpu.pipeline_mode<synchronous>, transform_indices = @transform_5, window_bounds = array<i64: 2, 4, 25>}, {pipeline_mode = #tpu.pipeline_mode<synchronous>, transform_indices = @transform_6, window_bounds = array<i64: 1, 128>}]} {
    %c0 = arith.constant 0 : index
    %c0_0 = arith.constant 0 : index
    %0 = vector.load %arg2[%c0, %c0_0] : memref<2x1xf32, #tpu.memory_space<vmem>>, vector<2x1xf32>
    %c0_1 = arith.constant 0 : index
    %c0_2 = arith.constant 0 : index
    %1 = vector.load %arg3[%c0_1, %c0_2] : memref<1x10xf32, #tpu.memory_space<vmem>>, vector<1x10xf32>
    %2 = vector.broadcast %0 : vector<2x1xf32> to vector<2x10xf32>
    %3 = vector.broadcast %1 : vector<1x10xf32> to vector<2x10xf32>
    %4 = arith.subf %2, %3 : vector<2x10xf32>
    %5 = math.absf %4 : vector<2x10xf32>
    %cst = arith.constant 1.000000e+00 : f32
    %6 = vector.broadcast %cst : f32 to vector<2x10xf32>
    %7 = arith.divf %5, %6 : vector<2x10xf32>
    %8 = arith.mulf %7, %7 : vector<2x10xf32>
    %cst_3 = arith.constant 0.000000e+00 : f32
    %9 = vector.broadcast %cst_3 : f32 to vector<2x10xf32>
    %10 = arith.subf %9, %8 : vector<2x10xf32>
    %cst_4 = arith.constant 5.000000e-01 : f32
    %11 = vector.broadcast %cst_4 : f32 to vector<2x10xf32>
    %12 = arith.mulf %10, %11 : vector<2x10xf32>
    %13 = math.exp %12 : vector<2x10xf32>
    %cst_5 = arith.constant 2.000000e-01 : f32
    %14 = vector.broadcast %cst_5 : f32 to vector<2x10xf32>
    %15 = arith.addf %13, %14 : vector<2x10xf32>
    %c0_6 = arith.constant 0 : index
    %c0_7 = arith.constant 0 : index
    %16 = vector.load %arg1[%c0_6, %c0_7] : memref<2x10xf32, #tpu.memory_space<vmem>>, vector<2x10xf32>
    %17 = arith.subf %16, %5 : vector<2x10xf32>
    %18 = math.absf %17 : vector<2x10xf32>
    %19 = arith.mulf %15, %18 : vector<2x10xf32>
    %20 = vector.shape_cast %19 : vector<2x10xf32> to vector<1x2x10xf32>
    %cst_8 = arith.constant dense<0.000000e+00> : vector<1xf32>
    %21 = vector.multi_reduction <add>, %20, %cst_8 [1, 2] : vector<1x2x10xf32> to vector<1xf32>
    %22 = vector.shape_cast %21 : vector<1xf32> to vector<1x1x1xf32>
    %23 = vector.extract %22[0, 0, 0] : f32 from vector<1x1x1xf32>
    %24 = vector.broadcast %23 : f32 to vector<1x1xf32>
    %25 = vector.shape_cast %15 : vector<2x10xf32> to vector<1x2x10xf32>
    %cst_9 = arith.constant dense<0.000000e+00> : vector<1xf32>
    %26 = vector.multi_reduction <add>, %25, %cst_9 [1, 2] : vector<1x2x10xf32> to vector<1xf32>
    %27 = vector.shape_cast %26 : vector<1xf32> to vector<1x1x1xf32>
    %28 = vector.extract %27[0, 0, 0] : f32 from vector<1x1x1xf32>
    %29 = vector.broadcast %28 : f32 to vector<1x1xf32>
    %cst_10 = arith.constant 9.99999971E-10 : f32
    %30 = vector.broadcast %cst_10 : f32 to vector<1x1xf32>
    %31 = arith.addf %29, %30 : vector<1x1xf32>
    %32 = arith.divf %24, %31 : vector<1x1xf32>
    %c0_11 = arith.constant 0 : index
    %c0_12 = arith.constant 0 : index
    %c0_13 = arith.constant 0 : index
    %33 = vector.load %arg4[%c0_11, %c0_12, %c0_13] : memref<2x4x25xf32, #tpu.memory_space<vmem>>, vector<2x4x25xf32>
    %c0_14 = arith.constant 0 : index
    %c0_15 = arith.constant 0 : index
    %c0_16 = arith.constant 0 : index
    %34 = vector.load %arg6[%c0_14, %c0_15, %c0_16] : memref<2x4x25xf32, #tpu.memory_space<vmem>>, vector<2x4x25xf32>
    %35 = arith.subf %33, %34 : vector<2x4x25xf32>
    %c0_17 = arith.constant 0 : index
    %c0_18 = arith.constant 0 : index
    %c0_19 = arith.constant 0 : index
    %36 = vector.load %arg5[%c0_17, %c0_18, %c0_19] : memref<2x4x25xf32, #tpu.memory_space<vmem>>, vector<2x4x25xf32>
    %37 = arith.subf %33, %36 : vector<2x4x25xf32>
    %38 = arith.mulf %35, %35 : vector<2x4x25xf32>
    %cst_20 = arith.constant dense<0.000000e+00> : vector<2x25xf32>
    %39 = vector.multi_reduction <add>, %38, %cst_20 [1] : vector<2x4x25xf32> to vector<2x25xf32>
    %40 = math.sqrt %39 : vector<2x25xf32>
    %41 = arith.mulf %37, %37 : vector<2x4x25xf32>
    %cst_21 = arith.constant dense<0.000000e+00> : vector<2x25xf32>
    %42 = vector.multi_reduction <add>, %41, %cst_21 [1] : vector<2x4x25xf32> to vector<2x25xf32>
    %43 = math.sqrt %42 : vector<2x25xf32>
    %44 = tpu.iota {dimensions = array<i32: 1>} : vector<2x25xi32>
    %c5_i32 = arith.constant 5 : i32
    %c0_i32 = arith.constant 0 : i32
    %45 = arith.cmpi eq, %c5_i32, %c0_i32 : i32
    %c1_i32 = arith.constant 1 : i32
    %46 = arith.select %45, %c1_i32, %c5_i32 : i32
    %47 = vector.broadcast %46 : i32 to vector<2x25xi32>
    %48 = arith.remsi %44, %47 : vector<2x25xi32>
    %c0_i32_22 = arith.constant 0 : i32
    %49 = vector.broadcast %c0_i32_22 : i32 to vector<2x25xi32>
    %50 = arith.cmpi ne, %48, %49 : vector<2x25xi32>
    %c0_i32_23 = arith.constant 0 : i32
    %51 = vector.broadcast %c0_i32_23 : i32 to vector<2x25xi32>
    %52 = arith.cmpi slt, %48, %51 : vector<2x25xi32>
    %c0_i32_24 = arith.constant 0 : i32
    %53 = arith.cmpi slt, %46, %c0_i32_24 : i32
    %54 = vector.broadcast %53 : i1 to vector<2x25xi1>
    %55 = vector.broadcast %54 : vector<2x25xi1> to vector<2x25xi1>
    %56 = arith.xori %52, %55 : vector<2x25xi1>
    %57 = arith.andi %56, %50 : vector<2x25xi1>
    %58 = vector.broadcast %46 : i32 to vector<2x25xi32>
    %59 = arith.addi %48, %58 : vector<2x25xi32>
    %60 = arith.select %57, %59, %48 : vector<2x25xi1>, vector<2x25xi32>
    %c2_i32 = arith.constant 2 : i32
    %61 = vector.broadcast %c2_i32 : i32 to vector<2x25xi32>
    %62 = arith.muli %61, %60 : vector<2x25xi32>
    %c4_i32 = arith.constant 4 : i32
    %63 = vector.broadcast %c4_i32 : i32 to vector<2x25xi32>
    %64 = arith.cmpi ne, %62, %63 : vector<2x25xi32>
    %65 = arith.extui %64 : vector<2x25xi1> to vector<2x25xi32>
    %66 = arith.sitofp %65 : vector<2x25xi32> to vector<2x25xf32>
    %67 = arith.subf %40, %43 : vector<2x25xf32>
    %cst_25 = arith.constant 1.000000e-01 : f32
    %68 = vector.broadcast %cst_25 : f32 to vector<2x25xf32>
    %69 = arith.addf %67, %68 : vector<2x25xf32>
    %cst_26 = arith.constant 0.000000e+00 : f32
    %70 = vector.broadcast %cst_26 : f32 to vector<2x25xf32>
    %71 = arith.maximumf %69, %70 : vector<2x25xf32>
    %72 = arith.mulf %66, %71 : vector<2x25xf32>
    %73 = vector.shape_cast %72 : vector<2x25xf32> to vector<1x2x25xf32>
    %cst_27 = arith.constant dense<0.000000e+00> : vector<1xf32>
    %74 = vector.multi_reduction <add>, %73, %cst_27 [1, 2] : vector<1x2x25xf32> to vector<1xf32>
    %75 = vector.shape_cast %74 : vector<1xf32> to vector<1x1x1xf32>
    %76 = vector.extract %75[0, 0, 0] : f32 from vector<1x1x1xf32>
    %77 = vector.broadcast %76 : f32 to vector<1x1xf32>
    %cst_28 = arith.constant 2.500000e-02 : f32
    %78 = vector.broadcast %cst_28 : f32 to vector<1x1xf32>
    %79 = arith.mulf %77, %78 : vector<1x1xf32>
    %80 = tpu.iota {dimensions = array<i32: 1>} : vector<1x128xi32>
    %c0_i32_29 = arith.constant 0 : i32
    %81 = vector.broadcast %c0_i32_29 : i32 to vector<1x128xi32>
    %82 = arith.cmpi eq, %80, %81 : vector<1x128xi32>
    %cst_30 = arith.constant 0.000000e+00 : f32
    %83 = vector.shape_cast %32 : vector<1x1xf32> to vector<1x1xf32>
    %84 = vector.broadcast %83 : vector<1x1xf32> to vector<1x128xf32>
    %85 = vector.broadcast %cst_30 : f32 to vector<1x128xf32>
    %86 = arith.select %82, %84, %85 : vector<1x128xi1>, vector<1x128xf32>
    %c1_i32_31 = arith.constant 1 : i32
    %87 = vector.broadcast %c1_i32_31 : i32 to vector<1x128xi32>
    %88 = arith.cmpi eq, %80, %87 : vector<1x128xi32>
    %cst_32 = arith.constant 0.000000e+00 : f32
    %89 = vector.shape_cast %79 : vector<1x1xf32> to vector<1x1xf32>
    %90 = vector.broadcast %89 : vector<1x1xf32> to vector<1x128xf32>
    %91 = vector.broadcast %cst_32 : f32 to vector<1x128xf32>
    %92 = arith.select %88, %90, %91 : vector<1x128xi1>, vector<1x128xf32>
    %93 = arith.addf %86, %92 : vector<1x128xf32>
    %c0_33 = arith.constant 0 : index
    %c0_34 = arith.constant 0 : index
    %94 = vector.load %arg7[%c0_33, %c0_34] : memref<1x128xf32, #tpu.memory_space<vmem>>, vector<1x128xf32>
    tpu.vector_store %arg7[%c0_33, %c0_34], %93 {strides = array<i32>} : memref<1x128xf32, #tpu.memory_space<vmem>>, vector<1x128xf32>,
    return
  }
  func.func @transform_0(%arg0: i32) -> (i32, i32) {
    %c0_i32 = arith.constant 0 : i32
    %c0_i32_0 = arith.constant 0 : i32
    %c0_i32_1 = arith.constant 0 : i32
    return %c0_i32, %c0_i32_0 : i32, i32
  }
  func.func @transform_1(%arg0: i32) -> (i32, i32) {
    %c0_i32 = arith.constant 0 : i32
    %c0_i32_0 = arith.constant 0 : i32
    %c0_i32_1 = arith.constant 0 : i32
    return %c0_i32, %c0_i32_0 : i32, i32
  }
  func.func @transform_2(%arg0: i32) -> (i32, i32) {
    %c0_i32 = arith.constant 0 : i32
    %c0_i32_0 = arith.constant 0 : i32
    %c0_i32_1 = arith.constant 0 : i32
    return %c0_i32, %c0_i32_0 : i32, i32
  }
  func.func @transform_3(%arg0: i32) -> (i32, i32, i32) {
    %c0_i32 = arith.constant 0 : i32
    %c0_i32_0 = arith.constant 0 : i32
    %c0_i32_1 = arith.constant 0 : i32
    %c0_i32_2 = arith.constant 0 : i32
    return %c0_i32, %c0_i32_0, %c0_i32_1 : i32, i32, i32
  }
  func.func @transform_4(%arg0: i32) -> (i32, i32, i32) {
    %c0_i32 = arith.constant 0 : i32
    %c0_i32_0 = arith.constant 0 : i32
    %c0_i32_1 = arith.constant 0 : i32
    %c0_i32_2 = arith.constant 0 : i32
    return %c0_i32, %c0_i32_0, %c0_i32_1 : i32, i32, i32
  }
  func.func @transform_5(%arg0: i32) -> (i32, i32, i32) {
    %c0_i32 = arith.constant 0 : i32
    %c0_i32_0 = arith.constant 0 : i32
    %c0_i32_1 = arith.constant 0 : i32
    %c0_i32_2 = arith.constant 0 : i32
    return %c0_i32, %c0_i32_0, %c0_i32_1 : i32, i32, i32
  }
  func.func @transform_6(%arg0: i32) -> (i32, i32) {
    %c0_i32 = arith.constant 0 : i32
    %c0_i32_0 = arith.constant 0 : i32
    %c0_i32_1 = arith.constant 0 : i32
    return %c0_i32, %c0_i32_0 : i32, i32
  }
}

</mosaic_0001>

<llo_original>
// kernel: tpu_custom_call.1
$region0: #{tpu_custom_call.1}
  #allocation0 [shape = 'u32[]', space=smem, size = 0x4, offset = 0x4, fixed_abs, tag = 'smem constant byte address 0x4 - core index']
  #allocation1 [shape = 'u32[144,128]{1,0:T(1,128)}', space=vmem, size = 0x12000, scoped, tag = 'internal scratch']
  %s0 = inlined_call_operand.vmem [shape: f32[2,10], index: 0, kind: input, shape index: {}]
  %s1 = inlined_call_operand.vmem [shape: f32[2,1], index: 1, kind: input, shape index: {}]
  %s2 = inlined_call_operand.hbm [shape: f32[1,10], index: 2, kind: input, shape index: {}]
  %s3 = inlined_call_operand.vmem [shape: f32[2,4,25], index: 3, kind: input, shape index: {}]
  %s4 = inlined_call_operand.vmem [shape: f32[2,4,25], index: 4, kind: input, shape index: {}]
  %s5 = inlined_call_operand.hbm [shape: f32[2,4,25], index: 5, kind: input, shape index: {}]
  %s6 = inlined_call_operand.hbm [shape: f32[1,128], index: 6, kind: output, shape index: {}]
  %s7 = sld [smem:[#allocation0]]
  $region42: #{tpu_custom_call.1} parent=0
    _
  %s9 = ssub.s32 1, %s7
  %s10 = scalar_select 0, %s9, %s7
  $region1: #{tpu_custom_call.1} parent=0
    #allocation2 [shape = 'u8[512]{0}', space=vmem, size = 0x400, scoped, tag = 'input window, operand 2, single buffered']
    #allocation3 [shape = 's32[1]{0}', space=sflag, size = 0x4, scoped, tag = 'scoped memory for tpu_custom_call.1']
    #allocation4 [shape = 's32[1]{0}', space=sflag, size = 0x4, scoped, tag = 'scoped memory for tpu_custom_call.1']
    #allocation5 [shape = 'u8[4096]{0}', space=vmem, size = 0x1000, scoped, tag = 'input window, operand 5, single buffered']
    #allocation6 [shape = 's32[1]{0}', space=sflag, size = 0x4, scoped, tag = 'scoped memory for tpu_custom_call.1']
    #allocation7 [shape = 'u8[512]{0}', space=vmem, size = 0x400, scoped, tag = 'output window, operand 0, single buffered']
    %11 = vsyncpa [#allocation3], 0
    %12 = vsyncpa [#allocation6], 0
    %13 = vsyncpa [#allocation4], 0
    // Predicated region
    $region2: #{tpu_custom_call.1} parent=1 // pred_check
      _
    $region3: #{tpu_custom_call.1} parent=1 // pred_check_branch
      %15 = sbr.rel (0) target = $region5
    $region4: #{tpu_custom_call.1} parent=1 // pred_region
      _
    $region5: #{tpu_custom_call.1} parent=1 // pred_fallthru
      _
    // Predicated region
    $region6: #{tpu_custom_call.1} parent=1 // pred_check
      _
    $region7: #{tpu_custom_call.1} parent=1 // pred_check_branch
      %17 = sbr.rel (0) target = $region9
    $region8: #{tpu_custom_call.1} parent=1 // pred_region
      _
    $region9: #{tpu_custom_call.1} parent=1 // pred_fallthru
      _
    // Predicated region
    $region10: #{tpu_custom_call.1} parent=1 // pred_check
      _
    $region11: #{tpu_custom_call.1} parent=1 // pred_check_branch
      %19 = sbr.rel (0) target = $region13
    $region12: #{tpu_custom_call.1} parent=1 // pred_region
      %s21 = ssub.s32 16, 16
      %22 = vsyncadd [#allocation3], %s21
      %s24 = sshll.u32 [#allocation2], 4
      %s25 = int_to_ptr.vmem [resolvable:$true] %s24
      %27 = dma.hbm_to_vmem [thread:$0]  %s2, 16, %s25, [#allocation3]
    $region13: #{tpu_custom_call.1} parent=1 // pred_fallthru
      _
    // Predicated region
    $region14: #{tpu_custom_call.1} parent=1 // pred_check
      _
    $region15: #{tpu_custom_call.1} parent=1 // pred_check_branch
      %29 = sbr.rel (0) target = $region17
    $region16: #{tpu_custom_call.1} parent=1 // pred_region
      _
    $region17: #{tpu_custom_call.1} parent=1 // pred_fallthru
      _
    // Predicated region
    $region18: #{tpu_custom_call.1} parent=1 // pred_check
      _
    $region19: #{tpu_custom_call.1} parent=1 // pred_check_branch
      %31 = sbr.rel (0) target = $region21
    $region20: #{tpu_custom_call.1} parent=1 // pred_region
      _
    $region21: #{tpu_custom_call.1} parent=1 // pred_fallthru
      _
    // Predicated region
    $region22: #{tpu_custom_call.1} parent=1 // pred_check
      _
    $region23: #{tpu_custom_call.1} parent=1 // pred_check_branch
      %33 = sbr.rel (0) target = $region25
    $region24: #{tpu_custom_call.1} parent=1 // pred_region
      %s35 = ssub.s32 128, 128
      %36 = vsyncadd [#allocation6], %s35
      %s37 = sshll.u32 [#allocation5], 4
      %s38 = int_to_ptr.vmem [resolvable:$true] %s37
      %43 = dma.hbm_to_vmem [thread:$0]  %s5, 128, %s38, [#allocation6], 64, 64, 4
    $region25: #{tpu_custom_call.1} parent=1 // pred_fallthru
      _
    // Predicated region
    $region26: #{tpu_custom_call.1} parent=1 // pred_check
      _
    $region27: #{tpu_custom_call.1} parent=1 // pred_check_branch
      %45 = sbr.rel (0) target = $region29
    $region28: #{tpu_custom_call.1} parent=1 // pred_region
      %46 = dma.done [#allocation3], 16
    $region29: #{tpu_custom_call.1} parent=1 // pred_fallthru
      _
    // Predicated region
    $region30: #{tpu_custom_call.1} parent=1 // pred_check
      _
    $region31: #{tpu_custom_call.1} parent=1 // pred_check_branch
      %48 = sbr.rel (0) target = $region33
    $region32: #{tpu_custom_call.1} parent=1 // pred_region
      %49 = dma.done [#allocation6], 128
    $region33: #{tpu_custom_call.1} parent=1 // pred_fallthru
      _
    %v50 = vld [vmem:[%s1] sm:$0x3]
    %v51 = vld [vmem:[#allocation2] sm:$0x1]
    %53 = vset.pattern.permute.xlu0 0
    %54 = vperm.xlu0 %53, %v50
    %v55 = vpop.permute.xlu0 %54
    %v58 = vlaneseq
    %v59 = vshrl.u32 %v58, 7
    %v60 = vsub.s32 0, %v59
    %v61 = vrot.slane %v51, %v60
    %v63 = vsub.f32 %v55, %v61
    %v64 = vand.u32 2147483647, %v63
    %v65 = vmul.f32 %v64, %v64
    %v66 = vsub.f32 0.0, %v65
    %v67 = vmul.f32 %v66, 0.5
    %v68 = vmul.f32 %v67, 1.442695
    %v69 = vpow.pop %v68
    %v70 = vadd.f32 %v69, 0.2
    %v71 = vld [vmem:[%s0] sm:$0x3]
    %v72 = vsub.f32 %v71, %v64
    %v73 = vand.u32 2147483647, %v72
    %v74 = vmul.f32 %v70, %v73
    %vm75 = vcmask 74752
    %v76 = vsel %vm75, %v74, 0.0
    %77 = vadd.xlane.f32.xlu0 %v76
    %v78 = vpop.xlane.xlu0 %77
    %v79 = vrot.slane %v78, 4
    %v80 = vadd.f32 %v78, %v79
    %v81 = vrot.slane %v80, 2
    %v82 = vadd.f32 %v80, %v81
    %v83 = vrot.slane %v82, 1
    %v84 = vadd.f32 %v82, %v83
    %s85 = vtos %v84
    %v86 = vstv %s85
    %v87 = vsel %vm75, %v70, 0.0
    %88 = vadd.xlane.f32.xlu0 %v87
    %v89 = vpop.xlane.xlu0 %88
    %v90 = vrot.slane %v89, 4
    %v91 = vadd.f32 %v89, %v90
    %v92 = vrot.slane %v91, 2
    %v93 = vadd.f32 %v91, %v92
    %v94 = vrot.slane %v93, 1
    %v95 = vadd.f32 %v93, %v94
    %s96 = vtos %v95
    %v97 = vstv %s96
    %v98 = vadd.f32 %v97, 1e-09
    %v99 = vrcp.pop %v98
    %v100 = vmul.f32 %v86, %v99
    %v101 = vld [vmem:[%s3] sm:$0xf]
    %v102 = vld [vmem:[%s3 + $0x4] sm:$0xf]
    %v103 = vld [vmem:[#allocation5] sm:$0xf]
    %v104 = vld [vmem:[#allocation5 + $0x4] sm:$0xf]
    %v105 = vsub.f32 %v101, %v103
    %v106 = vsub.f32 %v102, %v104
    %v107 = vld [vmem:[%s4] sm:$0xf]
    %v108 = vld [vmem:[%s4 + $0x4] sm:$0xf]
    %v109 = vsub.f32 %v101, %v107
    %v110 = vsub.f32 %v102, %v108
    %v111 = vmul.f32 %v105, %v105
    %v112 = vmul.f32 %v106, %v106
    %vm113 = vcmask 199680
    %v114 = vsel %vm113, %v111, 0.0
    %v115 = vrot.slane %v114, 4
    %v116 = vadd.f32 %v114, %v115
    %v117 = vrot.slane %v116, 2
    %v118 = vadd.f32 %v116, %v117
    %v119 = vrot.slane %v118, 1
    %v120 = vadd.f32 %v118, %v119
    %v121 = vsel %vm113, %v112, 0.0
    %v122 = vrot.slane %v121, 4
    %v123 = vadd.f32 %v121, %v122
    %v124 = vrot.slane %v123, 2
    %v125 = vadd.f32 %v123, %v124
    %v126 = vrot.slane %v125, 1
    %v127 = vadd.f32 %v125, %v126
    %v128 = vrsqrt.pop %v120
    %v129 = vmul.f32 %v120, %v128
    %vm130 = vcmp.eq.f32.partialorder %v120, inf
    %v131 = vsel %vm130, %v120, %v129
    %vm132 = vcmp.eq.f32.partialorder %v120, 0.0
    %v133 = vand.u32 %v120, 2147483648
    %v134 = vsel %vm132, %v133, %v131
    %v135 = vrsqrt.pop %v127
    %v136 = vmul.f32 %v127, %v135
    %vm137 = vcmp.eq.f32.partialorder %v127, inf
    %v138 = vsel %vm137, %v127, %v136
    %vm139 = vcmp.eq.f32.partialorder %v127, 0.0
    %v140 = vand.u32 %v127, 2147483648
    %v141 = vsel %vm139, %v140, %v138
    %v142 = vmul.f32 %v109, %v109
    %v143 = vmul.f32 %v110, %v110
    %v144 = vsel %vm113, %v142, 0.0
    %v145 = vrot.slane %v144, 4
    %v146 = vadd.f32 %v144, %v145
    %v147 = vrot.slane %v146, 2
    %v148 = vadd.f32 %v146, %v147
    %v149 = vrot.slane %v148, 1
    %v150 = vadd.f32 %v148, %v149
    %v151 = vsel %vm113, %v143, 0.0
    %v152 = vrot.slane %v151, 4
    %v153 = vadd.f32 %v151, %v152
    %v154 = vrot.slane %v153, 2
    %v155 = vadd.f32 %v153, %v154
    %v156 = vrot.slane %v155, 1
    %v157 = vadd.f32 %v155, %v156
    %v158 = vrsqrt.pop %v150
    %v159 = vmul.f32 %v150, %v158
    %vm160 = vcmp.eq.f32.partialorder %v150, inf
    %v161 = vsel %vm160, %v150, %v159
    %vm162 = vcmp.eq.f32.partialorder %v150, 0.0
    %v163 = vand.u32 %v150, 2147483648
    %v164 = vsel %vm162, %v163, %v161
    %v165 = vrsqrt.pop %v157
    %v166 = vmul.f32 %v157, %v165
    %vm167 = vcmp.eq.f32.partialorder %v157, inf
    %v168 = vsel %vm167, %v157, %v166
    %vm169 = vcmp.eq.f32.partialorder %v157, 0.0
    %v170 = vand.u32 %v157, 2147483648
    %v171 = vsel %vm169, %v170, %v168
    %v172 = vlaneseq
    %v173 = vand.u32 %v172, 127
    %vm174 = vcmp.lt.s32.totalorder %v173, 0
    %v175 = vsub.s32 0, %v173
    %v176 = vsel %vm174, %v175, %v173
    %v177 = vmul.u32.u64.compose %v176, 3435973837
    %v178 = vextract.low.u32 %v177
    %v179 = vextract.high.u32 %v177
    %v180 = vshrl.u32 %v179, 2
    %v181 = vmul.u32 %v180, 5
    %v182 = vsub.s32 %v176, %v181
    %v183 = vsub.s32 0, %v182
    %v184 = vsel %vm174, %v183, %v182
    %vm185 = vcmp.ne.s32.totalorder %v184, 0
    %vm186 = vcmp.lt.s32.totalorder %v184, 0
    %vm187 = vmand %vm186, %vm185
    %v188 = vadd.s32 %v184, 5
    %v189 = vsel %vm187, %v188, %v184
    %v190 = vmul.u32 %v189, 2
    %vm191 = vcmp.ne.s32.totalorder %v190, 4
    %v192 = vsel %vm191, 1, 0
    %v193 = vcvt.s32.f32 %v192
    %v194 = vsub.f32 %v134, %v164
    %v195 = vsub.f32 %v141, %v171
    %v196 = vadd.f32 %v194, 0.1
    %v197 = vadd.f32 %v195, 0.1
    %v198 = vmax.f32 %v196, 0.0
    %v199 = vmax.f32 %v197, 0.0
    %vm202 = vcmask 1041409
    %v203 = vsel %vm202, %v199, %v198
    %v205 = vmul.f32 %v193, %v203
    %vm206 = vcmask 197632
    %v207 = vsel %vm206, %v205, 0.0
    %208 = vadd.xlane.f32.xlu0 %v207
    %v209 = vpop.xlane.xlu0 %208
    %v210 = vrot.slane %v209, 4
    %v211 = vadd.f32 %v209, %v210
    %v212 = vrot.slane %v211, 2
    %v213 = vadd.f32 %v211, %v212
    %v214 = vrot.slane %v213, 1
    %v215 = vadd.f32 %v213, %v214
    %s216 = vtos %v215
    %v217 = vstv %s216
    %v218 = vmul.f32 %v217, 0.025
    %vm219 = vcmp.eq.s32.totalorder %v173, 0
    %v220 = vsel %vm219, %v100, 0.0
    %vm221 = vcmp.eq.s32.totalorder %v173, 1
    %v222 = vsel %vm221, %v218, 0.0
    %v223 = vadd.f32 %v220, %v222
    %224 = vst [vmem:[#allocation7] sm:$0x1] %v223
    // Predicated region
    $region34: #{tpu_custom_call.1} parent=1 // pred_check
      _
    $region35: #{tpu_custom_call.1} parent=1 // pred_check_branch
      %226 = sbr.rel (0) target = $region37
    $region36: #{tpu_custom_call.1} parent=1 // pred_region
      %s228 = ssub.s32 16, 16
      %229 = vsyncadd [#allocation4], %s228
      %s231 = sshll.u32 [#allocation7], 4
      %s232 = int_to_ptr.vmem [resolvable:$true] %s231
      %234 = dma.vmem_to_hbm [thread:$0]  %s232, 16, %s6, [#allocation4]
    $region37: #{tpu_custom_call.1} parent=1 // pred_fallthru
      _
    // Predicated region
    $region38: #{tpu_custom_call.1} parent=1 // pred_check
      _
    $region39: #{tpu_custom_call.1} parent=1 // pred_check_branch
      %236 = sbr.rel (0) target = $region41
    $region40: #{tpu_custom_call.1} parent=1 // pred_region
      %237 = dma.done [#allocation4], 16
    $region41: #{tpu_custom_call.1} parent=1 // pred_fallthru
      _
    %238 = vsyncpa [#allocation3], 1
    %239 = vsyncpa [#allocation6], 1
    %240 = vsyncpa [#allocation4], 1

</llo_original>
